<compile_context>
chip_gen: v7x
topology: tpu7x:2x2x1
jax: 0.10.0
libtpu: 0.0.40
codegen_flags: <defaults>
</compile_context>

<pallas_src>
import jax
import jax.numpy as jnp
from jax.experimental import pallas as pl
from jax.experimental.pallas import tpu as pltpu


# ----------------------------------------------------------------------------
# helpers
# ----------------------------------------------------------------------------

def _round_up(x, m):
    return ((x + m - 1) // m) * m


# Keep scoped VMEM comfortably under v7x's 64 MiB physical VMEM (also fine on
# v5e/v6e's 128 MiB).  Double-buffered footprints below stay well under this.
_VMEM_LIMIT = 48 * 1024 * 1024


def _pick_row_tile(n_rows, bytes_per_row, budget_bytes=8 << 20, min_rows=512):
    """Row (sublane) tile size.

    Big enough to amortize ~0.35us per grid step (~budget_bytes streamed per
    step), small enough that (a) >=4 grid steps remain when the array is large
    (so dimension_semantics='parallel' can shard across v7x's two TensorCores)
    and (b) the double-buffered footprint stays far below the VMEM limit.
    Returned tile is a multiple of 8 (sublane granularity); callers clamp to
    the full row count when it exceeds it (block == full dim is always legal).
    """
    t = max(min_rows, budget_bytes // max(bytes_per_row, 1))
    quarter = _round_up(-(-n_rows // 4), 8)          # cdiv(n_rows, 4), rounded to 8
    t = min(t, max(quarter, 8))
    t = min(t, _round_up(n_rows, 8))
    return max(8, _round_up(t, 8))


# ----------------------------------------------------------------------------
# Pallas kernels
# ----------------------------------------------------------------------------

def _make_kl_kernel(embedding_size, n_groups, group_starts, tile_rows):
    """Fused elementwise KL( N(mu_q,|sq|) || N(mu_p,|sp|) ) for entity embeddings
    and per-entity biases, priors broadcast in-kernel.

    Layout: unique entities (U) on the sublane axis; ent block (TU, 2E) holds
    [means | raw scales]; bias block (TU, 2) holds [mean, raw scale].
    Priors are compact (G, E)/(G, 1) tables resident in VMEM; the per-row prior
    is selected from the static group start offsets with implicit broadcasting.
    """
    E = embedding_size

    def kernel(ent_ref, bias_ref, pm_e_ref, ps_e_ref, pm_b_ref, ps_b_ref,
               kl_e_ref, kl_b_ref):
        mu_p_e, sp_e_raw = pm_e_ref[0:1, :], ps_e_ref[0:1, :]      # (1, E)
        mu_p_b, sp_b_raw = pm_b_ref[0:1, :], ps_b_ref[0:1, :]      # (1, 1)
        if n_groups > 1:
            row0 = pl.program_id(0) * tile_rows
            rows = row0 + jax.lax.broadcasted_iota(jnp.int32, (tile_rows, 1), 0)
            for g in range(1, n_groups):
                m = rows >= group_starts[g]                        # (TU, 1)
                mu_p_e = jnp.where(m, pm_e_ref[g:g + 1, :], mu_p_e)
                sp_e_raw = jnp.where(m, ps_e_ref[g:g + 1, :], sp_e_raw)
                mu_p_b = jnp.where(m, pm_b_ref[g:g + 1, :], mu_p_b)
                sp_b_raw = jnp.where(m, ps_b_ref[g:g + 1, :], sp_b_raw)

        def kl(mu_q, s_q_raw, mu_p, s_p_raw):
            sq = jnp.abs(s_q_raw)
            sp = jnp.abs(s_p_raw)
            # approx reciprocal lowers to the EUP slot (same slot as the log);
            # ~1e-3-level relative change in the regularizer, acceptable here.
            inv_sp = pl.reciprocal(sp, approx=True)
            r = sq * inv_sp
            d = (mu_q - mu_p) * inv_sp
            # 0.5*(r^2 + d^2 - 1 - log(r^2)) == 0.5*(r^2 + d^2 - 1) - log(r)
            return 0.5 * (r * r + d * d - 1.0) - jnp.log(r)

        kl_e_ref[...] = kl(ent_ref[:, :E], ent_ref[:, E:], mu_p_e, sp_e_raw)
        kl_b_ref[...] = kl(bias_ref[:, 0:1], bias_ref[:, 1:2], mu_p_b, sp_b_raw)

    return kernel


def _make_pred_kernel(embedding_size, n_groups):
    """pred[b] = global_bias + sum_g bias[b, g] + sum_e prod_g entity[b, g, e].

    Batch on the sublane axis; entity means packed as (TB, G*E); global-bias
    scalar comes from SMEM.
    """
    E, G = embedding_size, n_groups

    def kernel(gb_ref, b_ref, e_ref, out_ref):
        sum_b = jnp.sum(b_ref[...], axis=1, keepdims=True)          # (TB, 1)
        prod = e_ref[:, 0:E]
        for g in range(1, G):
            prod = prod * e_ref[:, g * E:(g + 1) * E]
        emb = jnp.sum(prod, axis=1, keepdims=True)                  # (TB, 1)
        out_ref[...] = gb_ref[0] + sum_b + emb

    return kernel


# ----------------------------------------------------------------------------
# Python wrappers around pallas_call
# ----------------------------------------------------------------------------

def fused_kl(ent_sel, bias_sel, prior_e_mean, prior_e_scale,
             prior_b_mean, prior_b_scale, group_starts):
    """ent_sel: (U, 2E) [means|raw scales]; bias_sel: (U, 2); priors: (G,E)/(G,1).

    Returns (kl_entity (U, E), kl_bias (U,)) — consumer layout, no transposes.
    """
    U, twoE = ent_sel.shape
    E = twoE // 2
    G = prior_e_mean.shape[0]

    bytes_per_row = (twoE + 2 + E + 1) * 4          # streamed in + out per row
    TU = _pick_row_tile(U, bytes_per_row)
    if TU >= U:
        TU = U                                      # block == full dim (always legal)
    grid = (pl.cdiv(U, TU),)

    data_spec_e = pl.BlockSpec((TU, twoE), lambda i: (i, 0))
    data_spec_b = pl.BlockSpec((TU, 2), lambda i: (i, 0))
    prior_spec_e = pl.BlockSpec((G, E), lambda i: (0, 0))    # resident in VMEM
    prior_spec_b = pl.BlockSpec((G, 1), lambda i: (0, 0))

    kl_e, kl_b = pl.pallas_call(
        _make_kl_kernel(E, G, tuple(group_starts), TU),
        grid=grid,
        in_specs=[data_spec_e, data_spec_b,
                  prior_spec_e, prior_spec_e, prior_spec_b, prior_spec_b],
        out_specs=[pl.BlockSpec((TU, E), lambda i: (i, 0)),
                   pl.BlockSpec((TU, 1), lambda i: (i, 0))],
        out_shape=(jax.ShapeDtypeStruct((U, E), jnp.float32),
                   jax.ShapeDtypeStruct((U, 1), jnp.float32)),
        compiler_params=pltpu.CompilerParams(
            dimension_semantics=("parallel",),
            vmem_limit_bytes=_VMEM_LIMIT),
    )(ent_sel.astype(jnp.float32), bias_sel.astype(jnp.float32),
      prior_e_mean.astype(jnp.float32), prior_e_scale.astype(jnp.float32),
      prior_b_mean.astype(jnp.float32), prior_b_scale.astype(jnp.float32))
    return kl_e, kl_b[:, 0]


def predict(global_bias_mean, bias_gathered, ent_gathered):
    """bias_gathered: (B, G); ent_gathered: (B, G*E); global_bias: (1,). Returns (B,)."""
    B, G = bias_gathered.shape
    GE = ent_gathered.shape[1]
    E = GE // G

    bytes_per_row = (G + GE + 1) * 4
    TB = _pick_row_tile(B, bytes_per_row)
    if TB >= B:
        TB = B
    grid = (pl.cdiv(B, TB),)

    out = pl.pallas_call(
        _make_pred_kernel(E, G),
        grid=grid,
        in_specs=[pl.BlockSpec(memory_space=pltpu.MemorySpace.SMEM),   # global bias scalar
                  pl.BlockSpec((TB, G), lambda i: (i, 0)),
                  pl.BlockSpec((TB, GE), lambda i: (i, 0))],
        out_specs=pl.BlockSpec((TB, 1), lambda i: (i, 0)),
        out_shape=jax.ShapeDtypeStruct((B, 1), jnp.float32),
        compiler_params=pltpu.CompilerParams(
            dimension_semantics=("parallel",),
            vmem_limit_bytes=_VMEM_LIMIT),
    )(global_bias_mean.astype(jnp.float32),
      bias_gathered.astype(jnp.float32),
      ent_gathered.astype(jnp.float32))
    return out[:, 0]


def _kl_normal_scalar(mu_q, s_q_raw, mu_p, s_p_raw):
    """1-element KL term in plain JAX (a pallas_call would be pure overhead)."""
    sq = jnp.abs(s_q_raw)
    sp = jnp.abs(s_p_raw)
    var_ratio = (sq / sp) ** 2
    t1 = ((mu_q - mu_p) / sp) ** 2
    return 0.5 * (var_ratio + t1 - 1.0 - jnp.log(var_ratio))


# ----------------------------------------------------------------------------
# CF module: deterministic param init + forward
# ----------------------------------------------------------------------------

def init_cf_params(key, embedding_size, n_groups, group_sizes,
                   alpha_0=300.0, start_scale=0.2):
    total = sum(group_sizes)
    k1, k2, k3 = jax.random.split(key, 3)
    return dict(
        alpha=jnp.array([alpha_0], jnp.float32),
        mean_global_bias_prior=jnp.array([0.0], jnp.float32),
        scale_global_bias_prior=jnp.array([1.0], jnp.float32),
        mean_global_bias=jax.random.normal(k1, (1,), jnp.float32),
        scale_global_bias=jnp.array([start_scale], jnp.float32),
        mean_group_bias_prior=[jnp.zeros((1,), jnp.float32) for _ in range(n_groups)],
        scale_group_bias_prior=[jnp.ones((1,), jnp.float32) for _ in range(n_groups)],
        bias_params=jnp.concatenate(
            [0.1 * jax.random.normal(k2, (total, 1), jnp.float32),
             start_scale * jnp.ones((total, 1), jnp.float32)], axis=1),
        mean_group_entity_prior=[jnp.zeros((embedding_size,), jnp.float32)
                                 for _ in range(n_groups)],
        scale_group_entity_prior=[jnp.ones((embedding_size,), jnp.float32)
                                  for _ in range(n_groups)],
        entity_params=jnp.concatenate(
            [1e-7 * jax.random.normal(k3, (total, embedding_size), jnp.float32),
             start_scale * jnp.ones((total, embedding_size), jnp.float32)], axis=1),
    )


def cf_forward(params, x, x_unique, embedding_size, n_groups, output='reg'):
    """Mirrors CF.forward(x, x_unique) (default closed_form_loss=False path)."""
    E = embedding_size
    cat_unique = jnp.concatenate(x_unique)                     # (U,)
    unique_sizes = [int(xu.shape[0]) for xu in x_unique]
    starts, acc = [], 0
    for s in unique_sizes:
        starts.append(acc)
        acc += s

    # ---- draw(): variational posterior tables for the batch's unique entities
    bias_sel = params['bias_params'][cat_unique]               # (U, 2)  [mean, raw scale]
    ent_sel = params['entity_params'][cat_unique]              # (U, 2E) [means | raw scales]

    # ---- compact per-group priors (resident in VMEM inside the KL kernel) ----
    prior_e_mean = jnp.stack(params['mean_group_entity_prior'], axis=0)    # (G, E)
    prior_e_scale = jnp.stack(params['scale_group_entity_prior'], axis=0)  # (G, E)
    prior_b_mean = jnp.stack(params['mean_group_bias_prior'], axis=0)      # (G, 1)
    prior_b_scale = jnp.stack(params['scale_group_bias_prior'], axis=0)    # (G, 1)

    # ---- prediction path: single combined gather per table, no transposes ----
    # TODO(synk): fuse these gathers into predict via scalar prefetch + in-kernel gather.
    idx = jnp.stack([x[g] + starts[g] for g in range(n_groups)], axis=1)   # (B, G)
    bias_mean_tbl = bias_sel[:, 0]                                         # (U,)
    ent_mean_tbl = ent_sel[:, :E]                                          # (U, E)
    bias_gathered = bias_mean_tbl[idx]                                     # (B, G)
    ent_gathered = ent_mean_tbl[idx].reshape(idx.shape[0], n_groups * E)   # (B, G*E)

    unscaled_pred = predict(params['mean_global_bias'], bias_gathered, ent_gathered)

    if output == 'reg':
        std_dev = jnp.sqrt(1.0 / jnp.abs(params['alpha']))
        likelihood = ('normal', unscaled_pred,
                      jnp.broadcast_to(std_dev, unscaled_pred.shape))
    else:
        likelihood = ('bernoulli_logits', unscaled_pred)

    # ---- KL terms ------------------------------------------------------------
    kl_global = _kl_normal_scalar(params['mean_global_bias'],
                                  params['scale_global_bias'],
                                  params['mean_global_bias_prior'],
                                  params['scale_global_bias_prior'])

    kl_entity, kl_bias = fused_kl(ent_sel, bias_sel,
                                  prior_e_mean, prior_e_scale,
                                  prior_b_mean, prior_b_scale, starts)

    kls = [kl_global, kl_bias, kl_entity]
    return likelihood, kls


# ----------------------------------------------------------------------------
# Demo
# ----------------------------------------------------------------------------

if __name__ == "__main__":
    N, M = 8, 8            # group_sizes (users, items)
    E = 4                  # embedding_size
    G = 2                  # n_groups
    B = 8                  # batch size

    params = init_cf_params(jax.random.PRNGKey(0), E, G, [N, M])

    # x_unique: unique *global* row indices per group (group-1 indices already
    # offset by N, as required by bias_params/entity_params indexing).
    x_unique = [jnp.array([0, 2, 3, 5], dtype=jnp.int32),
                jnp.array([N + 0, N + 1, N + 4, N + 7], dtype=jnp.int32)]
    # x: local indices into each group's unique set, one per batch element.
    kx0, kx1 = jax.random.split(jax.random.PRNGKey(1))
    x = [jax.random.randint(kx0, (B,), 0, x_unique[0].shape[0], jnp.int32),
         jax.random.randint(kx1, (B,), 0, x_unique[1].shape[0], jnp.int32)]

    likelihood, kls = cf_forward(params, x, x_unique, E, G, output='reg')

    jax.block_until_ready((likelihood[1], likelihood[2], kls))
    print("KERNEL_OK")
</pallas_src>

<mosaic_0001>
module attributes {stable_mosaic.version = 11 : i64} {
  func.func @kernel(%arg0: i32, %arg1: memref<1xf32, #tpu.memory_space<smem>>, %arg2: memref<8x2xf32, #tpu.memory_space<vmem>>, %arg3: memref<8x8xf32, #tpu.memory_space<vmem>>, %arg4: memref<8x1xf32, #tpu.memory_space<vmem>>) attributes {dimension_semantics = [#tpu.dimension_semantics<parallel>], iteration_bounds = array<i64: 1>, scalar_prefetch = 0 : i64, scratch_operands = 0 : i64, tpu.core_type = #tpu.core_type<tc>, window_params = [{transform_indices = @transform_0, window_bounds = array<i64: 1>}, {transform_indices = @transform_1, window_bounds = array<i64: 8, 2>}, {transform_indices = @transform_2, window_bounds = array<i64: 8, 8>}, {transform_indices = @transform_3, window_bounds = array<i64: 8, 1>}]} {
    %c0 = arith.constant 0 : index
    %c0_0 = arith.constant 0 : index
    %0 = vector.load %arg2[%c0, %c0_0] : memref<8x2xf32, #tpu.memory_space<vmem>>, vector<8x2xf32>
    %cst = arith.constant dense<0.000000e+00> : vector<8xf32>
    %1 = vector.multi_reduction <add>, %0, %cst [1] : vector<8x2xf32> to vector<8xf32>
    %2 = vector.shape_cast %1 : vector<8xf32> to vector<8x1xf32>
    %c0_1 = arith.constant 0 : index
    %c0_2 = arith.constant 0 : index
    %3 = vector.load %arg3[%c0_1, %c0_2] : memref<8x8xf32, #tpu.memory_space<vmem>>, vector<8x4xf32>
    %c0_3 = arith.constant 0 : index
    %c4 = arith.constant 4 : index
    %4 = vector.load %arg3[%c0_3, %c4] : memref<8x8xf32, #tpu.memory_space<vmem>>, vector<8x4xf32>
    %5 = arith.mulf %3, %4 : vector<8x4xf32>
    %cst_4 = arith.constant dense<0.000000e+00> : vector<8xf32>
    %6 = vector.multi_reduction <add>, %5, %cst_4 [1] : vector<8x4xf32> to vector<8xf32>
    %7 = vector.shape_cast %6 : vector<8xf32> to vector<8x1xf32>
    %c0_5 = arith.constant 0 : index
    %8 = memref.load %arg1[%c0_5] : memref<1xf32, #tpu.memory_space<smem>>
    %9 = vector.broadcast %8 : f32 to vector<8x1xf32>
    %10 = arith.addf %9, %2 : vector<8x1xf32>
    %11 = arith.addf %10, %7 : vector<8x1xf32>
    %c0_6 = arith.constant 0 : index
    %c0_7 = arith.constant 0 : index
    %12 = vector.load %arg4[%c0_6, %c0_7] : memref<8x1xf32, #tpu.memory_space<vmem>>, vector<8x1xf32>
    tpu.vector_store %arg4[%c0_6, %c0_7], %11 {strides = array<i32>} : memref<8x1xf32, #tpu.memory_space<vmem>>, vector<8x1xf32>,
    return
  }
  func.func @transform_0(%arg0: i32) -> i32 {
    %c0_i32 = arith.constant 0 : i32
    %c0_i32_0 = arith.constant 0 : i32
    return %c0_i32 : i32
  }
  func.func @transform_1(%arg0: i32) -> (i32, i32) {
    %c0_i32 = arith.constant 0 : i32
    %c0_i32_0 = arith.constant 0 : i32
    return %arg0, %c0_i32 : i32, i32
  }
  func.func @transform_2(%arg0: i32) -> (i32, i32) {
    %c0_i32 = arith.constant 0 : i32
    %c0_i32_0 = arith.constant 0 : i32
    return %arg0, %c0_i32 : i32, i32
  }
  func.func @transform_3(%arg0: i32) -> (i32, i32) {
    %c0_i32 = arith.constant 0 : i32
    %c0_i32_0 = arith.constant 0 : i32
    return %arg0, %c0_i32 : i32, i32
  }
}

</mosaic_0001>

<llo_original>
// kernel: tpu_custom_call.1
$region0: #{tpu_custom_call.1}
  #allocation0 [shape = 'u32[]', space=smem, size = 0x4, offset = 0x4, fixed_abs, tag = 'smem constant byte address 0x4 - core index']
  #allocation1 [shape = 'u32[144,128]{1,0:T(1,128)}', space=vmem, size = 0x12000, scoped, tag = 'internal scratch']
  #allocation2 [shape = 'f32[1]{0:T(128)S(6)}', space=smem, size = 0x200, scoped, tag = 'scoped memory for tpu_custom_call.1']
  %s0 = inlined_call_operand.<no memory space> [shape: f32[1], index: 0, kind: input, shape index: {}]
  %s1 = inlined_call_operand.vmem [shape: f32[8,2], index: 1, kind: input, shape index: {}]
  %s2 = inlined_call_operand.vmem [shape: f32[8,8], index: 2, kind: input, shape index: {}]
  %s3 = inlined_call_operand.vmem [shape: f32[8,1], index: 3, kind: output, shape index: {}]
  %s4 = sld [smem:[#allocation0]]
  $region22: #{tpu_custom_call.1} parent=0
    _
  %s6 = ssub.s32 1, %s4
  %s7 = scalar_select 0, %s6, %s4
  %8 = sst [smem:[#allocation2]] %s0
  // Predicated region
  $region2: #{tpu_custom_call.1} parent=0 // pred_check
    _
  $region3: #{tpu_custom_call.1} parent=0 // pred_check_branch
    %10 = sbr.rel (0) target = $region5
  $region4: #{tpu_custom_call.1} parent=0 // pred_region
    _
  $region5: #{tpu_custom_call.1} parent=0 // pred_fallthru
    _
  // Predicated region
  $region6: #{tpu_custom_call.1} parent=0 // pred_check
    _
  $region7: #{tpu_custom_call.1} parent=0 // pred_check_branch
    %12 = sbr.rel (0) target = $region9
  $region8: #{tpu_custom_call.1} parent=0 // pred_region
    _
  $region9: #{tpu_custom_call.1} parent=0 // pred_fallthru
    _
  // Predicated region
  $region10: #{tpu_custom_call.1} parent=0 // pred_check
    _
  $region11: #{tpu_custom_call.1} parent=0 // pred_check_branch
    %14 = sbr.rel (0) target = $region13
  $region12: #{tpu_custom_call.1} parent=0 // pred_region
    _
  $region13: #{tpu_custom_call.1} parent=0 // pred_fallthru
    _
  %v15 = vld [vmem:[%s1] sm:$0xff]
  %vm16 = vcmask 15360
  %v17 = vsel %vm16, %v15, 0.0
  %18 = vadd.xlane.f32.xlu0 %v17
  %v19 = vpop.xlane.xlu0 %18
  %v20 = vld [vmem:[%s2] sm:$0xff]
  %22 = vrot.lane.b32.xlu0 %v20, 124
  %v23 = vpop.permute.xlu0 %22
  %v25 = vmul.f32 %v20, %v23
  %vm26 = vcmask 31744
  %v27 = vsel %vm26, %v25, 0.0
  %28 = vadd.xlane.f32.xlu0 %v27
  %v29 = vpop.xlane.xlu0 %28
  %s30 = sld [smem:[#allocation2]]
  %v31 = vstv %s30
  %v32 = vadd.f32 %v31, %v19
  %v33 = vadd.f32 %v32, %v29
  %vm34 = vcmask 7168
  %35 = vst.msk [vmem:[%s3] sm:$0xff] %vm34, %v33
  // Predicated region
  $region14: #{tpu_custom_call.1} parent=0 // pred_check
    _
  $region15: #{tpu_custom_call.1} parent=0 // pred_check_branch
    %37 = sbr.rel (0) target = $region17
  $region16: #{tpu_custom_call.1} parent=0 // pred_region
    _
  $region17: #{tpu_custom_call.1} parent=0 // pred_fallthru
    _
  // Predicated region
  $region18: #{tpu_custom_call.1} parent=0 // pred_check
    _
  $region19: #{tpu_custom_call.1} parent=0 // pred_check_branch
    %39 = sbr.rel (0) target = $region21
  $region20: #{tpu_custom_call.1} parent=0 // pred_region
    _
  $region21: #{tpu_custom_call.1} parent=0 // pred_fallthru
    _

</llo_original>
